<compile_context>
chip_gen: v7x
topology: tpu7x:2x2x1
jax: 0.10.0
libtpu: 0.0.40
codegen_flags: <defaults>
</compile_context>

<pallas_src>
import functools

import jax
import jax.numpy as jnp
import numpy as np
from jax.experimental import pallas as pl
from jax.experimental.pallas import tpu as pltpu

IN_CHANNELS = 38
REDUCED_CHANNELS = IN_CHANNELS // 3  # 12
N_SEGMENT = 32
BN_EPS = 1e-5

# Cap on batch elements per grid step.  Lane-padded f32 temporaries at TB=128
# stay comfortably inside v7x's 64 MiB physical VMEM; raise to 256-384 on
# v5e/v6e (128 MiB VMEM) for very large N.
DEFAULT_BLOCK_N = 128
# Aim for at least this many grid steps: >=2 restores double-buffered
# DMA/compute overlap, >=4 shards cleanly across v7x's two TensorCores.
MIN_GRID_STEPS = 4


def _action_kernel(x_ref, wsq_ref, bnb_ref, wdw_ref, wex_ref, o_ref):
    tb, t, c = x_ref.shape          # (TB, T, C) block
    cr = wsq_ref.shape[1]
    rows = tb * t

    # ---- Load the whole block; flatten batch*time for the MXU matmuls.
    x = x_ref[...]                                     # (TB, T, C)  f32
    x2d = x.reshape(rows, c)                           # free: T % 8 == 0

    # ---- squeeze 1x1 conv.  BN scale is folded into the bf16 weight
    # host-side; only the shift survives as a bias.  bf16 x bf16 -> f32 keeps
    # the MXU on its native single-pass path.
    x3 = jnp.dot(x2d.astype(jnp.bfloat16), wsq_ref[...],
                 preferred_element_type=jnp.float32)   # (rows, Cr)
    x3 = x3 + bnb_ref[...]                             # (1, Cr) bias

    wdw = wdw_ref[...]                                 # (3, Cr); row 0 = w0 - 1
    w0m1 = wdw[0:1, :]
    w1 = wdw[1:2, :]
    w2 = wdw[2:3, :]

    # ---- local time index of each flattened row (per batch element).
    pos = jax.lax.broadcasted_iota(jnp.int32, (rows, cr), 0)
    lt = (pos & (t - 1)) if (t & (t - 1)) == 0 else (pos % t)

    # ---- Temporal (depthwise k=3 + diff) part via XLU sublane rotations
    # (no relayout copies):  s1[r] = x3[r+1], s2[r] = x3[r+2].
    # Rows whose shift would cross a batch boundary (or run past T) are masked
    # to zero, so the wrap-around of the roll never leaks between elements.
    s1 = pltpu.roll(x3, shift=rows - 1, axis=0)        # == roll by -1
    s2 = pltpu.roll(x3, shift=rows - 2, axis=0)        # == roll by -2
    s1 = jnp.where(lt < t - 1, s1, 0.0)
    s2 = jnp.where(lt < t - 2, s2, 0.0)

    gated = x3 * w0m1 + s1 * w1 + s2 * w2              # valid for lt < T-1
    x_p3 = jnp.where(lt == t - 1, x3, gated)           # last row: x3[T-1]

    # ---- expand 1x1 conv (bf16 MXU, f32 accumulation).
    e = jnp.dot(x_p3.astype(jnp.bfloat16), wex_ref[...],
                preferred_element_type=jnp.float32)    # (rows, C)

    # ---- sigmoid gate as EUP exp + EUP approx reciprocal (no VPU divide),
    # residual, one large store:  out = x * sigmoid(e) + x.
    gate = pl.reciprocal(1.0 + jnp.exp(-e), approx=True)
    y = x2d * (gate + 1.0)
    o_ref[...] = y.reshape(tb, t, c).astype(o_ref.dtype)


@functools.partial(jax.jit, static_argnames=("block_n", "min_grid_steps"))
def action_forward(x, wsq, bn_shift, wdw, wex, *,
                   block_n=DEFAULT_BLOCK_N, min_grid_steps=MIN_GRID_STEPS):
    n, t, c = x.shape
    cr = wsq.shape[1]
    # The free (TB,T,C)->(TB*T,C) reshape and the sublane-roll trick assume T
    # is a multiple of the 8-row sublane tile (T = 32 for this module).
    assert t % 8 == 0, f"T must be a multiple of 8, got {t}"

    # Grid sizing: at least `min_grid_steps` steps so the pipeline overlaps
    # DMA with compute and v7x can split the parallel axis across both cores,
    # but never more than block_n batch elements per step (VMEM cap).
    tb = max(1, min(block_n, pl.cdiv(n, min_grid_steps)))
    grid_n = pl.cdiv(n, tb)
    # Ragged last block (n % tb != 0): padded rows compute garbage that is
    # never written back (OOB stores are dropped); the lt masks keep valid
    # rows independent of the padding brought in by the rolls.

    cost = pl.CostEstimate(
        flops=4 * n * t * c * cr + 10 * n * t * c,
        transcendentals=2 * n * t * c,
        bytes_accessed=2 * n * t * c * 4 + 2 * (c * cr + cr * c) + 4 * 4 * cr,
    )

    return pl.pallas_call(
        _action_kernel,
        out_shape=jax.ShapeDtypeStruct((n, t, c), x.dtype),
        grid_spec=pltpu.PrefetchScalarGridSpec(
            num_scalar_prefetch=0,
            grid=(grid_n,),
            in_specs=[
                pl.BlockSpec((tb, t, c), lambda i: (i, 0, 0)),   # x batch slab
                pl.BlockSpec((c, cr), lambda i: (0, 0)),         # squeeze w (BN-scaled, bf16)
                pl.BlockSpec((1, cr), lambda i: (0, 0)),         # BN shift bias (f32)
                pl.BlockSpec((3, cr), lambda i: (0, 0)),         # taps [w0-1, w1, w2] (f32)
                pl.BlockSpec((cr, c), lambda i: (0, 0)),         # expand weight (bf16)
            ],
            out_specs=pl.BlockSpec((tb, t, c), lambda i: (i, 0, 0)),
        ),
        compiler_params=pltpu.CompilerParams(
            dimension_semantics=("parallel",),
            vmem_limit_bytes=48 * 1024 * 1024,
        ),
        cost_estimate=cost,
    )(x, wsq, bn_shift, wdw, wex)


# ----------------------------- host-side helpers -----------------------------

def make_raw_params(key):
    """Raw parameters with the PyTorch shapes / init-like scales."""
    c, cr = IN_CHANNELS, REDUCED_CHANNELS
    k = jax.random.split(key, 7)
    w_squeeze = 0.1 * jax.random.normal(k[0], (cr, c, 1), jnp.float32)   # Conv1d(C->Cr,1)
    w_dwconv = 0.2 * jax.random.normal(k[1], (cr, 1, 3), jnp.float32)    # Conv1d depthwise k3
    w_expand = 0.1 * jax.random.normal(k[2], (c, cr, 1), jnp.float32)    # Conv1d(Cr->C,1)
    gamma = 1.0 + 0.1 * jax.random.normal(k[3], (cr,), jnp.float32)
    beta = 0.1 * jax.random.normal(k[4], (cr,), jnp.float32)
    r_mean = 0.1 * jax.random.normal(k[5], (cr,), jnp.float32)
    r_var = jnp.abs(jax.random.normal(k[6], (cr,), jnp.float32)) + 0.5
    return w_squeeze, w_dwconv, w_expand, gamma, beta, r_mean, r_var


def pack_kernel_params(w_squeeze, w_dwconv, w_expand, gamma, beta, r_mean, r_var):
    """Repack raw params for the kernel: fold BN scale into wsq (bf16), fold
    the '-1' into the first depthwise tap, cast matmul weights to bf16."""
    cr = REDUCED_CHANNELS
    scale = gamma / jnp.sqrt(r_var + BN_EPS)                      # (Cr,)
    wsq = (jnp.transpose(w_squeeze[:, :, 0]) * scale[None, :]).astype(jnp.bfloat16)  # (C, Cr)
    bn_shift = (beta - r_mean * scale).reshape(1, cr)             # (1, Cr) f32
    wdw = jnp.transpose(w_dwconv[:, 0, :])                        # (3, Cr)
    wdw = wdw.at[0, :].add(-1.0)                                  # fold the "- x3[t]" term
    wex = jnp.transpose(w_expand[:, :, 0]).astype(jnp.bfloat16)   # (Cr, C)
    return wsq, bn_shift, wdw, wex


def action_reference(x, w_squeeze, w_dwconv, w_expand, gamma, beta, r_mean, r_var):
    """Pure-JAX reference mirroring the PyTorch forward exactly (NTC layout)."""
    wsq = jnp.transpose(w_squeeze[:, :, 0])                       # (C, Cr)
    wex = jnp.transpose(w_expand[:, :, 0])                        # (Cr, C)
    wdw = jnp.transpose(w_dwconv[:, 0, :])                        # (3, Cr)
    x3 = jnp.einsum("ntc,cr->ntr", x, wsq, precision=jax.lax.Precision.HIGHEST)
    scale = gamma / jnp.sqrt(r_var + BN_EPS)
    x3 = (x3 - r_mean) * scale + beta
    xp = jnp.pad(x3, ((0, 0), (1, 1), (0, 0)))
    conv = xp[:, :-2] * wdw[0] + xp[:, 1:-1] * wdw[1] + xp[:, 2:] * wdw[2]
    diff = conv[:, 1:] - x3[:, :-1]
    x_p3 = jnp.concatenate([diff, x3[:, -1:]], axis=1)
    e = jnp.einsum("ntr,rc->ntc", x_p3, wex, precision=jax.lax.Precision.HIGHEST)
    return x * jax.nn.sigmoid(e) + x


if __name__ == "__main__":
    key = jax.random.PRNGKey(0)
    kx, kp = jax.random.split(key)
    T, C = N_SEGMENT, IN_CHANNELS

    raw = make_raw_params(kp)
    kern_params = pack_kernel_params(*raw)

    # N=8  -> TB=2, even 4-step grid (pipeline overlap + v7x megacore split).
    # N=13 -> TB=4, grid=4 with a ragged last block (exercises dropped OOB rows).
    for n in (8, 13):
        x = jax.random.normal(kx, (n, T, C), jnp.float32)
        ref = action_reference(x, *raw)
        out = jax.block_until_ready(action_forward(x, *kern_params))
        assert out.shape == (n, T, C) and out.dtype == jnp.float32
        # 3e-3 tolerance: kernel uses bf16 MXU operands + approx reciprocal,
        # reference is f32 HIGHEST.
        np.testing.assert_allclose(np.asarray(out), np.asarray(ref),
                                   rtol=3e-3, atol=3e-3)
    print("KERNEL_OK")
</pallas_src>

<mosaic_0001>
module attributes {stable_mosaic.version = 11 : i64} {
  func.func @_action_kernel(%arg0: i32, %arg1: memref<2x32x38xf32, #tpu.memory_space<vmem>>, %arg2: memref<38x12xbf16, #tpu.memory_space<vmem>>, %arg3: memref<1x12xf32, #tpu.memory_space<vmem>>, %arg4: memref<3x12xf32, #tpu.memory_space<vmem>>, %arg5: memref<12x38xbf16, #tpu.memory_space<vmem>>, %arg6: memref<2x32x38xf32, #tpu.memory_space<vmem>>) attributes {dimension_semantics = [#tpu.dimension_semantics<parallel>], iteration_bounds = array<i64: 4>, scalar_prefetch = 0 : i64, scratch_operands = 0 : i64, tpu.core_type = #tpu.core_type<tc>, window_params = [{transform_indices = @transform_0, window_bounds = array<i64: 2, 32, 38>}, {pipeline_mode = #tpu.pipeline_mode<synchronous>, transform_indices = @transform_1, window_bounds = array<i64: 38, 12>}, {pipeline_mode = #tpu.pipeline_mode<synchronous>, transform_indices = @transform_2, window_bounds = array<i64: 1, 12>}, {pipeline_mode = #tpu.pipeline_mode<synchronous>, transform_indices = @transform_3, window_bounds = array<i64: 3, 12>}, {pipeline_mode = #tpu.pipeline_mode<synchronous>, transform_indices = @transform_4, window_bounds = array<i64: 12, 38>}, {transform_indices = @transform_5, window_bounds = array<i64: 2, 32, 38>}]} {
    %c0 = arith.constant 0 : index
    %c0_0 = arith.constant 0 : index
    %c0_1 = arith.constant 0 : index
    %0 = vector.load %arg1[%c0, %c0_0, %c0_1] : memref<2x32x38xf32, #tpu.memory_space<vmem>>, vector<2x32x38xf32>
    %1 = vector.shape_cast %0 : vector<2x32x38xf32> to vector<64x38xf32>
    %2 = arith.truncf %1 : vector<64x38xf32> to vector<64x38xbf16>
    %c0_2 = arith.constant 0 : index
    %c0_3 = arith.constant 0 : index
    %3 = vector.load %arg2[%c0_2, %c0_3] : memref<38x12xbf16, #tpu.memory_space<vmem>>, vector<38x12xbf16>
    %cst = arith.constant dense<0.000000e+00> : vector<64x12xf32>
    %4 = tpu.matmul %2, %3, %cst {dimension_numbers = #tpu.dot_dimension_numbers<[1], [0], [0], [1], [0, 0, 1, 1], [], []>} : vector<64x38xbf16>, vector<38x12xbf16>, vector<64x12xf32> -> vector<64x12xf32>
    %c0_4 = arith.constant 0 : index
    %c0_5 = arith.constant 0 : index
    %5 = vector.load %arg3[%c0_4, %c0_5] : memref<1x12xf32, #tpu.memory_space<vmem>>, vector<1x12xf32>
    %6 = vector.broadcast %5 : vector<1x12xf32> to vector<64x12xf32>
    %7 = arith.addf %4, %6 : vector<64x12xf32>
    %c0_6 = arith.constant 0 : index
    %c0_7 = arith.constant 0 : index
    %8 = vector.load %arg4[%c0_6, %c0_7] : memref<3x12xf32, #tpu.memory_space<vmem>>, vector<3x12xf32>
    %9 = vector.extract_strided_slice %8 {offsets = [0, 0], sizes = [1, 12], strides = [1, 1]} : vector<3x12xf32> to vector<1x12xf32>
    %10 = vector.extract_strided_slice %8 {offsets = [1, 0], sizes = [1, 12], strides = [1, 1]} : vector<3x12xf32> to vector<1x12xf32>
    %11 = vector.extract_strided_slice %8 {offsets = [2, 0], sizes = [1, 12], strides = [1, 1]} : vector<3x12xf32> to vector<1x12xf32>
    %12 = tpu.iota {dimensions = array<i32: 0>} : vector<64x12xi32>
    %c31_i32 = arith.constant 31 : i32
    %13 = vector.broadcast %c31_i32 : i32 to vector<64x12xi32>
    %14 = arith.andi %12, %13 : vector<64x12xi32>
    %c63_i32 = arith.constant 63 : i32
    %15 = tpu.dynamic_rotate %7 by %c63_i32 dim 0 : vector<64x12xf32>, i32 -> vector<64x12xf32>
    %c62_i32 = arith.constant 62 : i32
    %16 = tpu.dynamic_rotate %7 by %c62_i32 dim 0 : vector<64x12xf32>, i32 -> vector<64x12xf32>
    %c31_i32_8 = arith.constant 31 : i32
    %17 = vector.broadcast %c31_i32_8 : i32 to vector<64x12xi32>
    %18 = arith.cmpi slt, %14, %17 : vector<64x12xi32>
    %cst_9 = arith.constant 0.000000e+00 : f32
    %19 = vector.broadcast %cst_9 : f32 to vector<64x12xf32>
    %20 = arith.select %18, %15, %19 : vector<64x12xi1>, vector<64x12xf32>
    %c30_i32 = arith.constant 30 : i32
    %21 = vector.broadcast %c30_i32 : i32 to vector<64x12xi32>
    %22 = arith.cmpi slt, %14, %21 : vector<64x12xi32>
    %cst_10 = arith.constant 0.000000e+00 : f32
    %23 = vector.broadcast %cst_10 : f32 to vector<64x12xf32>
    %24 = arith.select %22, %16, %23 : vector<64x12xi1>, vector<64x12xf32>
    %25 = vector.broadcast %9 : vector<1x12xf32> to vector<64x12xf32>
    %26 = arith.mulf %7, %25 : vector<64x12xf32>
    %27 = vector.broadcast %10 : vector<1x12xf32> to vector<64x12xf32>
    %28 = arith.mulf %20, %27 : vector<64x12xf32>
    %29 = arith.addf %26, %28 : vector<64x12xf32>
    %30 = vector.broadcast %11 : vector<1x12xf32> to vector<64x12xf32>
    %31 = arith.mulf %24, %30 : vector<64x12xf32>
    %32 = arith.addf %29, %31 : vector<64x12xf32>
    %c31_i32_11 = arith.constant 31 : i32
    %33 = vector.broadcast %c31_i32_11 : i32 to vector<64x12xi32>
    %34 = arith.cmpi eq, %14, %33 : vector<64x12xi32>
    %35 = arith.select %34, %7, %32 : vector<64x12xi1>, vector<64x12xf32>
    %36 = arith.truncf %35 : vector<64x12xf32> to vector<64x12xbf16>
    %c0_12 = arith.constant 0 : index
    %c0_13 = arith.constant 0 : index
    %37 = vector.load %arg5[%c0_12, %c0_13] : memref<12x38xbf16, #tpu.memory_space<vmem>>, vector<12x38xbf16>
    %cst_14 = arith.constant dense<0.000000e+00> : vector<64x38xf32>
    %38 = tpu.matmul %36, %37, %cst_14 {dimension_numbers = #tpu.dot_dimension_numbers<[1], [0], [0], [1], [0, 0, 1, 1], [], []>} : vector<64x12xbf16>, vector<12x38xbf16>, vector<64x38xf32> -> vector<64x38xf32>
    %cst_15 = arith.constant 0.000000e+00 : f32
    %39 = vector.broadcast %cst_15 : f32 to vector<64x38xf32>
    %40 = arith.subf %39, %38 : vector<64x38xf32>
    %41 = math.exp %40 : vector<64x38xf32>
    %cst_16 = arith.constant 1.000000e+00 : f32
    %42 = vector.broadcast %cst_16 : f32 to vector<64x38xf32>
    %43 = arith.addf %42, %41 : vector<64x38xf32>
    %44 = tpu.reciprocal %43 {approx = true} : vector<64x38xf32> -> vector<64x38xf32>
    %cst_17 = arith.constant 1.000000e+00 : f32
    %45 = vector.broadcast %cst_17 : f32 to vector<64x38xf32>
    %46 = arith.addf %44, %45 : vector<64x38xf32>
    %47 = arith.mulf %1, %46 : vector<64x38xf32>
    %48 = vector.shape_cast %47 : vector<64x38xf32> to vector<2x32x38xf32>
    %c0_18 = arith.constant 0 : index
    %c0_19 = arith.constant 0 : index
    %c0_20 = arith.constant 0 : index
    %49 = vector.load %arg6[%c0_18, %c0_19, %c0_20] : memref<2x32x38xf32, #tpu.memory_space<vmem>>, vector<2x32x38xf32>
    tpu.vector_store %arg6[%c0_18, %c0_19, %c0_20], %48 {strides = array<i32>} : memref<2x32x38xf32, #tpu.memory_space<vmem>>, vector<2x32x38xf32>,
    return
  }
  func.func @transform_0(%arg0: i32) -> (i32, i32, i32) {
    %c0_i32 = arith.constant 0 : i32
    %c0_i32_0 = arith.constant 0 : i32
    %c0_i32_1 = arith.constant 0 : i32
    return %arg0, %c0_i32, %c0_i32_0 : i32, i32, i32
  }
  func.func @transform_1(%arg0: i32) -> (i32, i32) {
    %c0_i32 = arith.constant 0 : i32
    %c0_i32_0 = arith.constant 0 : i32
    %c0_i32_1 = arith.constant 0 : i32
    return %c0_i32, %c0_i32_0 : i32, i32
  }
  func.func @transform_2(%arg0: i32) -> (i32, i32) {
    %c0_i32 = arith.constant 0 : i32
    %c0_i32_0 = arith.constant 0 : i32
    %c0_i32_1 = arith.constant 0 : i32
    return %c0_i32, %c0_i32_0 : i32, i32
  }
  func.func @transform_3(%arg0: i32) -> (i32, i32) {
    %c0_i32 = arith.constant 0 : i32
    %c0_i32_0 = arith.constant 0 : i32
    %c0_i32_1 = arith.constant 0 : i32
    return %c0_i32, %c0_i32_0 : i32, i32
  }
  func.func @transform_4(%arg0: i32) -> (i32, i32) {
    %c0_i32 = arith.constant 0 : i32
    %c0_i32_0 = arith.constant 0 : i32
    %c0_i32_1 = arith.constant 0 : i32
    return %c0_i32, %c0_i32_0 : i32, i32
  }
  func.func @transform_5(%arg0: i32) -> (i32, i32, i32) {
    %c0_i32 = arith.constant 0 : i32
    %c0_i32_0 = arith.constant 0 : i32
    %c0_i32_1 = arith.constant 0 : i32
    return %arg0, %c0_i32, %c0_i32_0 : i32, i32, i32
  }
}

</mosaic_0001>

<llo_original>
// kernel: action_forward.1
$region0: #{action_forward.1}
  #allocation0 [shape = 'u32[]', space=smem, size = 0x4, offset = 0x4, fixed_abs, tag = 'smem constant byte address 0x4 - core index']
  #allocation1 [shape = 'u32[144,128]{1,0:T(1,128)}', space=vmem, size = 0x12000, scoped, tag = 'internal scratch']
  %s0 = inlined_call_operand.hbm [shape: f32[8,32,38], index: 0, kind: input, shape index: {}]
  %s1 = inlined_call_operand.vmem [shape: bf16[38,12], index: 1, kind: input, shape index: {}]
  %s2 = inlined_call_operand.vmem [shape: f32[1,12], index: 2, kind: input, shape index: {}]
  %s3 = inlined_call_operand.vmem [shape: f32[3,12], index: 3, kind: input, shape index: {}]
  %s4 = inlined_call_operand.vmem [shape: bf16[12,38], index: 4, kind: input, shape index: {}]
  %s5 = inlined_call_operand.hbm [shape: f32[8,32,38], index: 5, kind: output, shape index: {}]
  %s6 = sld [smem:[#allocation0]]
  $region57: #{action_forward.1} parent=0
    _
  %s8 = ssub.s32 1, %s6
  %s9 = scalar_select 0, %s8, %s6
  $region1: #{action_forward.1} parent=0
    #allocation2 [shape = 'u8[65536]{0}', space=vmem, size = 0x10000, scoped, tag = 'input window, operand 0']
    #allocation3 [shape = 's32[2]{0}', space=sflag, size = 0x8, scoped, tag = 'scoped memory for action_forward.1']
    #allocation4 [shape = 's32[2]{0}', space=sflag, size = 0x8, scoped, tag = 'scoped memory for action_forward.1']
    #allocation5 [shape = 'u8[65536]{0}', space=vmem, size = 0x10000, scoped, tag = 'output window, operand 0']
    %10 = vsyncpa [#allocation3], 0
    %s11 = scalar_lea.sflag [#allocation3], 1
    %12 = vsyncpa %s11, 0
    %13 = vsyncpa [#allocation4], 0
    %s14 = scalar_lea.sflag [#allocation4], 1
    %15 = vsyncpa %s14, 0
    loop: start=0, step=1, limit=6
    $region2: #{action_forward.1} parent=1 // loop_pre_header
      _
    $region3: #{action_forward.1} parent=1 // loop_header
      %s17 = sphi 0, %s21
      %p18 = scmp.ge.s32.totalorder %s17, 6
      %s27 = sphi 0, %s29
      %s30 = sphi 0, %s27
      %s31 = sphi 0, %s30
      %s47 = sphi 0, %s31
      %s51 = sphi 0, %s51
      %s53 = sphi 0, %s51
      %s54 = sphi 0, %s53
      %s68 = sphi 0, %s54
      %s72 = sphi 0, %s72
      %s74 = sphi 0, %s72
      %s75 = sphi 0, %s74
      %s89 = sphi 0, %s75
      %s93 = sphi 0, %s93
      %s95 = sphi 0, %s93
      %s96 = sphi 0, %s95
      %s110 = sphi 0, %s96
      %s114 = sphi 0, %s114
      %s116 = sphi 0, %s114
      %s117 = sphi 0, %s116
      %s131 = sphi 0, %s117
      %s137 = sphi 0, %s139
      %s140 = sphi 0, %s137
      %s141 = sphi 0, %s140
      %s157 = sphi 0, %s141
    $region4: #{action_forward.1} parent=1 // loop_header_branch
      %20 = sbr.rel (%p18) target = $region8
    $region5: #{action_forward.1} parent=1 // loop_body
      %s22 = ssub.s32 %s17, 1
      %s23 = ssub.s32 %s17, 2
      %s24 = sadd.s32 %s17, 1
      %s25 = ssub.s32 %s17, %s24
      %p26 = scmp.eq.s32.totalorder %s25, 0
      %s28 = sadd.s32 %s27, 1
      %s29 = scalar_select %p26, %s27, %s28
      %p32 = pneg %p26
      %p33 = scmp.eq.s32.totalorder %s17, 3
      %p34 = por %p32, %p33
      %p35 = scmp.ne.s32.totalorder %s27, %s30
      %p36 = scmp.eq.s32.totalorder %s17, 0
      %p37 = por %p35, %p36
      %p38 = scmp.ne.s32.totalorder %s27, %s30
      %p39 = scmp.eq.s32.totalorder %s22, 3
      %p40 = por %p38, %p39
      %p41 = scmp.ne.s32.totalorder %s30, %s31
      %p42 = scmp.eq.s32.totalorder %s22, 0
      %p43 = por %p41, %p42
      %p44 = scmp.ne.s32.totalorder %s30, %s31
      %p45 = scmp.eq.s32.totalorder %s23, 3
      %p46 = por %p44, %p45
      %p48 = scmp.ne.s32.totalorder %s31, %s47
      %p49 = scmp.eq.s32.totalorder %s23, 0
      %p50 = por %p48, %p49
      %s52 = sadd.s32 %s51, 1
      %p55 = scmp.eq.s32.totalorder %s17, 3
      %p56 = scmp.ne.s32.totalorder %s51, %s53
      %p57 = scmp.eq.s32.totalorder %s17, 0
      %p58 = por %p56, %p57
      %p59 = scmp.ne.s32.totalorder %s51, %s53
      %p60 = scmp.eq.s32.totalorder %s22, 3
      %p61 = por %p59, %p60
      %p62 = scmp.ne.s32.totalorder %s53, %s54
      %p63 = scmp.eq.s32.totalorder %s22, 0
      %p64 = por %p62, %p63
      %p65 = scmp.ne.s32.totalorder %s53, %s54
      %p66 = scmp.eq.s32.totalorder %s23, 3
      %p67 = por %p65, %p66
      %p69 = scmp.ne.s32.totalorder %s54, %s68
      %p70 = scmp.eq.s32.totalorder %s23, 0
      %p71 = por %p69, %p70
      %s73 = sadd.s32 %s72, 1
      %p76 = scmp.eq.s32.totalorder %s17, 3
      %p77 = scmp.ne.s32.totalorder %s72, %s74
      %p78 = scmp.eq.s32.totalorder %s17, 0
      %p79 = por %p77, %p78
      %p80 = scmp.ne.s32.totalorder %s72, %s74
      %p81 = scmp.eq.s32.totalorder %s22, 3
      %p82 = por %p80, %p81
      %p83 = scmp.ne.s32.totalorder %s74, %s75
      %p84 = scmp.eq.s32.totalorder %s22, 0
      %p85 = por %p83, %p84
      %p86 = scmp.ne.s32.totalorder %s74, %s75
      %p87 = scmp.eq.s32.totalorder %s23, 3
      %p88 = por %p86, %p87
      %p90 = scmp.ne.s32.totalorder %s75, %s89
      %p91 = scmp.eq.s32.totalorder %s23, 0
      %p92 = por %p90, %p91
      %s94 = sadd.s32 %s93, 1
      %p97 = scmp.eq.s32.totalorder %s17, 3
      %p98 = scmp.ne.s32.totalorder %s93, %s95
      %p99 = scmp.eq.s32.totalorder %s17, 0
      %p100 = por %p98, %p99
      %p101 = scmp.ne.s32.totalorder %s93, %s95
      %p102 = scmp.eq.s32.totalorder %s22, 3
      %p103 = por %p101, %p102
      %p104 = scmp.ne.s32.totalorder %s95, %s96
      %p105 = scmp.eq.s32.totalorder %s22, 0
      %p106 = por %p104, %p105
      %p107 = scmp.ne.s32.totalorder %s95, %s96
      %p108 = scmp.eq.s32.totalorder %s23, 3
      %p109 = por %p107, %p108
      %p111 = scmp.ne.s32.totalorder %s96, %s110
      %p112 = scmp.eq.s32.totalorder %s23, 0
      %p113 = por %p111, %p112
      %s115 = sadd.s32 %s114, 1
      %p118 = scmp.eq.s32.totalorder %s17, 3
      %p119 = scmp.ne.s32.totalorder %s114, %s116
      %p120 = scmp.eq.s32.totalorder %s17, 0
      %p121 = por %p119, %p120
      %p122 = scmp.ne.s32.totalorder %s114, %s116
      %p123 = scmp.eq.s32.totalorder %s22, 3
      %p124 = por %p122, %p123
      %p125 = scmp.ne.s32.totalorder %s116, %s117
      %p126 = scmp.eq.s32.totalorder %s22, 0
      %p127 = por %p125, %p126
      %p128 = scmp.ne.s32.totalorder %s116, %s117
      %p129 = scmp.eq.s32.totalorder %s23, 3
      %p130 = por %p128, %p129
      %p132 = scmp.ne.s32.totalorder %s117, %s131
      %p133 = scmp.eq.s32.totalorder %s23, 0
      %p134 = por %p132, %p133
      %s135 = ssub.s32 %s17, %s24
      %p136 = scmp.eq.s32.totalorder %s135, 0
      %s138 = sadd.s32 %s137, 1
      %s139 = scalar_select %p136, %s137, %s138
      %p142 = pneg %p136
      %p143 = scmp.eq.s32.totalorder %s17, 3
      %p144 = por %p142, %p143
      %p145 = scmp.ne.s32.totalorder %s137, %s140
      %p146 = scmp.eq.s32.totalorder %s17, 0
      %p147 = por %p145, %p146
      %p148 = scmp.ne.s32.totalorder %s137, %s140
      %p149 = scmp.eq.s32.totalorder %s22, 3
      %p150 = por %p148, %p149
      %p151 = scmp.ne.s32.totalorder %s140, %s141
      %p152 = scmp.eq.s32.totalorder %s22, 0
      %p153 = por %p151, %p152
      %p154 = scmp.ne.s32.totalorder %s140, %s141
      %p155 = scmp.eq.s32.totalorder %s23, 3
      %p156 = por %p154, %p155
      %p158 = scmp.ne.s32.totalorder %s141, %s157
      %p159 = scmp.eq.s32.totalorder %s23, 0
      %p160 = por %p158, %p159
      %p161 = scmp.le.s32.totalorder 1, %s17
      %p162 = scmp.lt.s32.totalorder %s17, 5
      %p163 = pnand %p161, %p162
      %p164 = pneg %p163
      // Predicated region
      $region9: #{action_forward.1} parent=5 // pred_check
        _
      $region10: #{action_forward.1} parent=5 // pred_check_branch
        %166 = sbr.rel (%p163) target = $region12
      $region11: #{action_forward.1} parent=5 // pred_region
        %s167 = ssub.s32 %s17, 1
        // Predicated region
        $region13: #{action_forward.1} parent=11 // pred_check
          %p168 = pneg %p64
        $region14: #{action_forward.1} parent=11 // pred_check_branch
          %170 = sbr.rel (%p168) target = $region16
        $region15: #{action_forward.1} parent=11 // pred_region
          _
        $region16: #{action_forward.1} parent=11 // pred_fallthru
          _
        // Predicated region
        $region17: #{action_forward.1} parent=11 // pred_check
          %p171 = pneg %p85
        $region18: #{action_forward.1} parent=11 // pred_check_branch
          %173 = sbr.rel (%p171) target = $region20
        $region19: #{action_forward.1} parent=11 // pred_region
          _
        $region20: #{action_forward.1} parent=11 // pred_fallthru
          _
        // Predicated region
        $region21: #{action_forward.1} parent=11 // pred_check
          %p174 = pneg %p106
        $region22: #{action_forward.1} parent=11 // pred_check_branch
          %176 = sbr.rel (%p174) target = $region24
        $region23: #{action_forward.1} parent=11 // pred_region
          _
        $region24: #{action_forward.1} parent=11 // pred_fallthru
          _
        // Predicated region
        $region25: #{action_forward.1} parent=11 // pred_check
          %p177 = pneg %p127
        $region26: #{action_forward.1} parent=11 // pred_check_branch
          %179 = sbr.rel (%p177) target = $region28
        $region27: #{action_forward.1} parent=11 // pred_region
          _
        $region28: #{action_forward.1} parent=11 // pred_fallthru
          _
      $region12: #{action_forward.1} parent=5 // pred_fallthru
        _
      %p180 = scmp.lt.s32.totalorder %s17, 4
      // Predicated region
      $region29: #{action_forward.1} parent=5 // pred_check
        %p181 = pneg %p180
      $region30: #{action_forward.1} parent=5 // pred_check_branch
        %183 = sbr.rel (%p181) target = $region32
      $region31: #{action_forward.1} parent=5 // pred_region
        // Predicated region
        $region33: #{action_forward.1} parent=31 // pred_check
          %p184 = pneg %p37
        $region34: #{action_forward.1} parent=31 // pred_check_branch
          %186 = sbr.rel (%p184) target = $region36
        $region35: #{action_forward.1} parent=31 // pred_region
          %s187 = sand.u32 %s27, 1
          %s188 = scalar_lea.sflag [#allocation3], %s187
          %s189 = sand.u32 %s27, 1
          %s190 = smul.addr %s189, 64
          %s191 = scalar_lea.vmem [#allocation2], %s190
          %s192 = smul.u32 2, %s17
          %s194 = ssub.s32 1024, 1024
          %195 = vsyncadd %s188, %s194
          %s196 = smul.addr %s192, 4
          %s197 = smul.addr %s196, 128
          %s198 = scalar_lea.hbm %s0, %s197
          %s199 = sshll.u32 %s191, 4
          %s200 = int_to_ptr.vmem [resolvable:$true] %s199
          %205 = dma.hbm_to_vmem [thread:$0]  %s198, 1024, %s200, %s188, 128, 128, 8
        $region36: #{action_forward.1} parent=31 // pred_fallthru
          _
      $region32: #{action_forward.1} parent=5 // pred_fallthru
        _
      %p206 = scmp.le.s32.totalorder 1, %s17
      %p207 = scmp.lt.s32.totalorder %s17, 5
      %p208 = pnand %p206, %p207
      %p209 = pneg %p208
      // Predicated region
      $region37: #{action_forward.1} parent=5 // pred_check
        _
      $region38: #{action_forward.1} parent=5 // pred_check_branch
        %211 = sbr.rel (%p208) target = $region40
      $region39: #{action_forward.1} parent=5 // pred_region
        %s212 = ssub.s32 %s17, 1
        %s213 = sand.u32 %s30, 1
        %s214 = scalar_lea.sflag [#allocation3], %s213
        %s215 = sand.u32 %s30, 1
        %s216 = smul.addr %s215, 64
        %s217 = scalar_lea.vmem [#allocation2], %s216
        // Predicated region
        $region41: #{action_forward.1} parent=39 // pred_check
          %p218 = pneg %p43
        $region42: #{action_forward.1} parent=39 // pred_check_branch
          %220 = sbr.rel (%p218) target = $region44
        $region43: #{action_forward.1} parent=39 // pred_region
          %221 = dma.done %s214, 1024
        $region44: #{action_forward.1} parent=39 // pred_fallthru
          _
        %s222 = sand.u32 %s30, 1
        %s223 = scalar_lea.sflag [#allocation3], %s222
        %s224 = sand.u32 %s30, 1
        %s225 = smul.addr %s224, 64
        %s226 = scalar_lea.vmem [#allocation2], %s225
        %p227 = pneg %p43
        %p228 = pneg %p40
        %p229 = pneg %p64
        %p230 = pneg %p61
        %p231 = pneg %p85
        %p232 = pneg %p82
        %p233 = pneg %p106
        %p234 = pneg %p103
        %p235 = pneg %p127
        %p236 = pneg %p124
        %p237 = pneg %p153
        %p238 = pneg %p150
        %s239 = sand.u32 %s140, 1
        %s240 = scalar_lea.sflag [#allocation4], %s239
        %s241 = sand.u32 %s140, 1
        %s242 = smul.addr %s241, 64
        %s243 = scalar_lea.vmem [#allocation5], %s242
        %s244 = smul.u32 2, %s22
        %s245 = smul.u32 2, %s22
        %v247 = vld [vmem:[%s217] sm:$0xff]
        %v248 = vld [vmem:[%s217 + $0x8] sm:$0xff]
        %v249 = vld [vmem:[%s217 + $0x10] sm:$0xff]
        %v250 = vld [vmem:[%s217 + $0x18] sm:$0xff]
        %v251 = vld [vmem:[%s217 + $0x20] sm:$0xff]
        %v252 = vld [vmem:[%s217 + $0x28] sm:$0xff]
        %v253 = vld [vmem:[%s217 + $0x30] sm:$0xff]
        %v254 = vld [vmem:[%s217 + $0x38] sm:$0xff]
        %v255 = vpack.c.bf16 %v248, %v247
        %v256 = vpack.c.bf16 %v250, %v249
        %v257 = vpack.c.bf16 %v252, %v251
        %v258 = vpack.c.bf16 %v254, %v253
        %v259 = vld [vmem:[%s1] sm:$0xf]
        %v260 = vld [vmem:[%s1 + $0x4] sm:$0xf]
        %v261 = vld [vmem:[%s1 + $0x8] sm:$0xf]
        %v262 = vld [vmem:[%s1 + $0xc] sm:$0xf]
        %v263 = vld [vmem:[%s1 + $0x10] sm:$0x7]
        %v264 = vld [vmem:[%s2] sm:$0x1]
        %v266 = vlaneseq
        %v267 = vshrl.u32 %v266, 7
        %v268 = vsub.s32 0, %v267
        %v269 = vrot.slane %v264, %v268
        %v276 = vunpack.c.l.b16 %v259
        %v277 = vunpack.c.l.b16 %v260
        %v278 = vunpack.c.l.b16 %v261
        %v279 = vunpack.c.l.b16 %v262
        %v280 = vunpack.c.l.b16 %v263
        %v281 = vpack.c.b16 %v277, %v276
        %v282 = vpack.c.b16 %v279, %v278
        %v283 = vpack.c.b16 %v280, %v280
        %vm286 = vcmask 310272
        %v288 = vsel %vm286, %v255, 0
        %v291 = vsel %vm286, %v256, 0
        %v294 = vsel %vm286, %v257, 0
        %v297 = vsel %vm286, %v258, 0
        %vm299 = vcmask 1042432
        %v301 = vsel %vm299, %v283, 0
        %303 = vmatprep.subr.bf16.mxu0 0
        %304 = vmatpush1.bf16.msra.mxu0 %v281
        %305 = vmatprep.subr.bf16.mxu0 0
        %306 = vmatpush1.bf16.msra.mxu0 %v282
        %307 = vmatprep.subr.bf16.mxu0 0
        %308 = vmatpush1.bf16.msra.mxu0 %v301
        %309 = vmatprep.subr.bf16.mxu0 0
        %310 = vmatpush1.bf16.msra.mxu0 0
        %311 = vmatprep.subr.bf16.mxu0 0
        %312 = vmatpush1.bf16.msra.mxu0 0
        %313 = vmatprep.subr.bf16.mxu0 0
        %314 = vmatpush1.bf16.msra.mxu0 0
        %315 = vmatprep.subr.bf16.mxu0 0
        %316 = vmatpush1.bf16.msra.mxu0 0
        %317 = vmatprep.subr.bf16.mxu0 0
        %318 = vmatpush1.bf16.msra.mxu0 0
        %319 = vmatprep.subr.bf16.mxu0 0
        %320 = vmatpush1.bf16.msra.mxu0 0
        %321 = vmatprep.subr.bf16.mxu0 0
        %322 = vmatpush1.bf16.msra.mxu0 0
        %323 = vmatprep.subr.bf16.mxu0 0
        %324 = vmatpush1.bf16.msra.mxu0 0
        %325 = vmatprep.subr.bf16.mxu0 0
        %326 = vmatpush1.bf16.msra.mxu0 0
        %327 = vmatprep.subr.bf16.mxu0 0
        %328 = vmatpush1.bf16.msra.mxu0 0
        %329 = vmatprep.subr.bf16.mxu0 0
        %330 = vmatpush1.bf16.msra.mxu0 0
        %331 = vmatprep.subr.bf16.mxu0 0
        %332 = vmatpush1.bf16.msra.mxu0 0
        %333 = vmatprep.subr.bf16.mxu0 0
        %334 = vmatpush1.bf16.msra.mxu0 0
        %335 = vmatprep.mubr.bf16.mxu0 0
        %336 = vmatmul.mubr.bf16.gmra.mrb[0].mxu0 %v288
        %v337 = vpop.f32.mrb[0].mxu0
        %v338 = vadd.f32 %v269, %v337
        %v339 = vpop.f32.mrb[0].mxu0
        %v340 = vpop.f32.mrb[0].mxu0
        %v341 = vadd.f32 %v269, %v340
        %v342 = vpop.f32.mrb[0].mxu0
        %343 = vmatprep.mubr.bf16.mxu0 0
        %344 = vmatmul.mubr.bf16.gmra.mrb[0].mxu0 %v291
        %v345 = vpop.f32.mrb[0].mxu0
        %v346 = vadd.f32 %v269, %v345
        %v347 = vpop.f32.mrb[0].mxu0
        %v348 = vpop.f32.mrb[0].mxu0
        %v349 = vadd.f32 %v269, %v348
        %v350 = vpop.f32.mrb[0].mxu0
        %351 = vmatprep.mubr.bf16.mxu0 0
        %352 = vmatmul.mubr.bf16.gmra.mrb[0].mxu0 %v294
        %v353 = vpop.f32.mrb[0].mxu0
        %v354 = vadd.f32 %v269, %v353
        %v355 = vpop.f32.mrb[0].mxu0
        %v356 = vpop.f32.mrb[0].mxu0
        %v357 = vadd.f32 %v269, %v356
        %v358 = vpop.f32.mrb[0].mxu0
        %359 = vmatprep.mubr.bf16.mxu0 0
        %360 = vmatmul.mubr.bf16.gmra.mrb[0].mxu0 %v297
        %v361 = vpop.f32.mrb[0].mxu0
        %v362 = vadd.f32 %v269, %v361
        %v363 = vpop.f32.mrb[0].mxu0
        %v364 = vpop.f32.mrb[0].mxu0
        %v365 = vadd.f32 %v269, %v364
        %v366 = vpop.f32.mrb[0].mxu0
        %367 = vdwg.mxu0
        %v368 = vld [vmem:[%s3] sm:$0x7]
        %v369 = vlaneseq
        %v370 = vshrl.u32 %v369, 7
        %v371 = vadd.s32 %v370, 8
        %v372 = vadd.s32 %v370, 16
        %v373 = vadd.s32 %v370, 24
        %v374 = vadd.s32 %v370, 32
        %v375 = vadd.s32 %v370, 40
        %v376 = vadd.s32 %v370, 48
        %v377 = vadd.s32 %v370, 56
        %v378 = vand.u32 %v370, 31
        %v379 = vand.u32 %v371, 31
        %v380 = vand.u32 %v372, 31
        %v381 = vand.u32 %v373, 31
        %v382 = vand.u32 %v374, 31
        %v383 = vand.u32 %v375, 31
        %v384 = vand.u32 %v376, 31
        %v385 = vand.u32 %v377, 31
        %v386 = vrot.slane %v338, 1
        %v387 = vrot.slane %v341, 1
        %v388 = vrot.slane %v346, 1
        %v389 = vrot.slane %v349, 1
        %v390 = vrot.slane %v354, 1
        %v391 = vrot.slane %v357, 1
        %v392 = vrot.slane %v362, 1
        %v393 = vrot.slane %v365, 1
        %vm394 = vcmp.lt.s32.totalorder %v370, 7
        %v395 = vsel %vm394, %v392, %v393
        %v396 = vsel %vm394, %v391, %v392
        %v397 = vsel %vm394, %v390, %v391
        %v398 = vsel %vm394, %v389, %v390
        %v399 = vsel %vm394, %v388, %v389
        %v400 = vsel %vm394, %v387, %v388
        %v401 = vsel %vm394, %v386, %v387
        %v402 = vsel %vm394, %v393, %v386
        %v403 = vrot.slane %v338, 2
        %v404 = vrot.slane %v341, 2
        %v405 = vrot.slane %v346, 2
        %v406 = vrot.slane %v349, 2
        %v407 = vrot.slane %v354, 2
        %v408 = vrot.slane %v357, 2
        %v409 = vrot.slane %v362, 2
        %v410 = vrot.slane %v365, 2
        %vm411 = vcmp.lt.s32.totalorder %v370, 6
        %v412 = vsel %vm411, %v409, %v410
        %v413 = vsel %vm411, %v408, %v409
        %v414 = vsel %vm411, %v407, %v408
        %v415 = vsel %vm411, %v406, %v407
        %v416 = vsel %vm411, %v405, %v406
        %v417 = vsel %vm411, %v404, %v405
        %v418 = vsel %vm411, %v403, %v404
        %v419 = vsel %vm411, %v410, %v403
        %vm420 = vcmp.lt.s32.totalorder %v378, 31
        %vm421 = vcmp.lt.s32.totalorder %v379, 31
        %vm422 = vcmp.lt.s32.totalorder %v380, 31
        %vm423 = vcmp.lt.s32.totalorder %v381, 31
        %vm424 = vcmp.lt.s32.totalorder %v382, 31
        %vm425 = vcmp.lt.s32.totalorder %v383, 31
        %vm426 = vcmp.lt.s32.totalorder %v384, 31
        %vm427 = vcmp.lt.s32.totalorder %v385, 31
        %v428 = vsel %vm420, %v401, 0.0
        %v429 = vsel %vm421, %v400, 0.0
        %v430 = vsel %vm422, %v399, 0.0
        %v431 = vsel %vm423, %v398, 0.0
        %v432 = vsel %vm424, %v397, 0.0
        %v433 = vsel %vm425, %v396, 0.0
        %v434 = vsel %vm426, %v395, 0.0
        %v435 = vsel %vm427, %v402, 0.0
        %vm436 = vcmp.lt.s32.totalorder %v378, 30
        %vm437 = vcmp.lt.s32.totalorder %v379, 30
        %vm438 = vcmp.lt.s32.totalorder %v380, 30
        %vm439 = vcmp.lt.s32.totalorder %v381, 30
        %vm440 = vcmp.lt.s32.totalorder %v382, 30
        %vm441 = vcmp.lt.s32.totalorder %v383, 30
        %vm442 = vcmp.lt.s32.totalorder %v384, 30
        %vm443 = vcmp.lt.s32.totalorder %v385, 30
        %v444 = vsel %vm436, %v418, 0.0
        %v445 = vsel %vm437, %v417, 0.0
        %v446 = vsel %vm438, %v416, 0.0
        %v447 = vsel %vm439, %v415, 0.0
        %v448 = vsel %vm440, %v414, 0.0
        %v449 = vsel %vm441, %v413, 0.0
        %v450 = vsel %vm442, %v412, 0.0
        %v451 = vsel %vm443, %v419, 0.0
        %v452 = vlaneseq
        %v453 = vshrl.u32 %v452, 7
        %v454 = vsub.s32 0, %v453
        %v455 = vrot.slane %v368, %v454
        %v456 = vmul.f32 %v338, %v455
        %v457 = vmul.f32 %v341, %v455
        %v458 = vmul.f32 %v346, %v455
        %v459 = vmul.f32 %v349, %v455
        %v460 = vmul.f32 %v354, %v455
        %v461 = vmul.f32 %v357, %v455
        %v462 = vmul.f32 %v362, %v455
        %v463 = vmul.f32 %v365, %v455
        %v464 = vlaneseq
        %v465 = vshrl.u32 %v464, 7
        %v466 = vsub.s32 1, %v465
        %v467 = vrot.slane %v368, %v466
        %v468 = vmul.f32 %v428, %v467
        %v469 = vmul.f32 %v429, %v467
        %v470 = vmul.f32 %v430, %v467
        %v471 = vmul.f32 %v431, %v467
        %v472 = vmul.f32 %v432, %v467
        %v473 = vmul.f32 %v433, %v467
        %v474 = vmul.f32 %v434, %v467
        %v475 = vmul.f32 %v435, %v467
        %v476 = vadd.f32 %v456, %v468
        %v477 = vadd.f32 %v457, %v469
        %v478 = vadd.f32 %v458, %v470
        %v479 = vadd.f32 %v459, %v471
        %v480 = vadd.f32 %v460, %v472
        %v481 = vadd.f32 %v461, %v473
        %v482 = vadd.f32 %v462, %v474
        %v483 = vadd.f32 %v463, %v475
        %v484 = vlaneseq
        %v485 = vshrl.u32 %v484, 7
        %v486 = vsub.s32 2, %v485
        %v487 = vrot.slane %v368, %v486
        %v488 = vmul.f32 %v444, %v487
        %v489 = vmul.f32 %v445, %v487
        %v490 = vmul.f32 %v446, %v487
        %v491 = vmul.f32 %v447, %v487
        %v492 = vmul.f32 %v448, %v487
        %v493 = vmul.f32 %v449, %v487
        %v494 = vmul.f32 %v450, %v487
        %v495 = vmul.f32 %v451, %v487
        %v496 = vadd.f32 %v476, %v488
        %v497 = vadd.f32 %v477, %v489
        %v498 = vadd.f32 %v478, %v490
        %v499 = vadd.f32 %v479, %v491
        %v500 = vadd.f32 %v480, %v492
        %v501 = vadd.f32 %v481, %v493
        %v502 = vadd.f32 %v482, %v494
        %v503 = vadd.f32 %v483, %v495
        %vm504 = vcmp.eq.s32.totalorder %v378, 31
        %vm505 = vcmp.eq.s32.totalorder %v379, 31
        %vm506 = vcmp.eq.s32.totalorder %v380, 31
        %vm507 = vcmp.eq.s32.totalorder %v381, 31
        %vm508 = vcmp.eq.s32.totalorder %v382, 31
        %vm509 = vcmp.eq.s32.totalorder %v383, 31
        %vm510 = vcmp.eq.s32.totalorder %v384, 31
        %vm511 = vcmp.eq.s32.totalorder %v385, 31
        %v512 = vsel %vm504, %v338, %v496
        %v513 = vsel %vm505, %v341, %v497
        %v514 = vsel %vm506, %v346, %v498
        %v515 = vsel %vm507, %v349, %v499
        %v516 = vsel %vm508, %v354, %v500
        %v517 = vsel %vm509, %v357, %v501
        %v518 = vsel %vm510, %v362, %v502
        %v519 = vsel %vm511, %v365, %v503
        %v520 = vpack.c.bf16 %v513, %v512
        %v521 = vpack.c.bf16 %v515, %v514
        %v522 = vpack.c.bf16 %v517, %v516
        %v523 = vpack.c.bf16 %v519, %v518
        %v524 = vld [vmem:[%s4] sm:$0xf]
        %v525 = vld [vmem:[%s4 + $0x4] sm:$0x3]
        %v528 = vunpack.c.l.b16 %v524
        %v529 = vunpack.c.l.b16 %v525
        %v530 = vpack.c.b16 %v529, %v528
        %vm531 = vcmask 97280
        %v533 = vsel %vm531, %v520, 0
        %v536 = vsel %vm531, %v521, 0
        %v539 = vsel %vm531, %v522, 0
        %v542 = vsel %vm531, %v523, 0
        %vm544 = vcmask 1045504
        %v546 = vsel %vm544, %v530, 0
        %548 = vmatprep.subr.bf16.mxu0 0
        %549 = vmatpush1.bf16.msra.mxu0 %v546
        %550 = vmatprep.subr.bf16.mxu0 0
        %551 = vmatpush1.bf16.msra.mxu0 0
        %552 = vmatprep.subr.bf16.mxu0 0
        %553 = vmatpush1.bf16.msra.mxu0 0
        %554 = vmatprep.subr.bf16.mxu0 0
        %555 = vmatpush1.bf16.msra.mxu0 0
        %556 = vmatprep.subr.bf16.mxu0 0
        %557 = vmatpush1.bf16.msra.mxu0 0
        %558 = vmatprep.subr.bf16.mxu0 0
        %559 = vmatpush1.bf16.msra.mxu0 0
        %560 = vmatprep.subr.bf16.mxu0 0
        %561 = vmatpush1.bf16.msra.mxu0 0
        %562 = vmatprep.subr.bf16.mxu0 0
        %563 = vmatpush1.bf16.msra.mxu0 0
        %564 = vmatprep.subr.bf16.mxu0 0
        %565 = vmatpush1.bf16.msra.mxu0 0
        %566 = vmatprep.subr.bf16.mxu0 0
        %567 = vmatpush1.bf16.msra.mxu0 0
        %568 = vmatprep.subr.bf16.mxu0 0
        %569 = vmatpush1.bf16.msra.mxu0 0
        %570 = vmatprep.subr.bf16.mxu0 0
        %571 = vmatpush1.bf16.msra.mxu0 0
        %572 = vmatprep.subr.bf16.mxu0 0
        %573 = vmatpush1.bf16.msra.mxu0 0
        %574 = vmatprep.subr.bf16.mxu0 0
        %575 = vmatpush1.bf16.msra.mxu0 0
        %576 = vmatprep.subr.bf16.mxu0 0
        %577 = vmatpush1.bf16.msra.mxu0 0
        %578 = vmatprep.subr.bf16.mxu0 0
        %579 = vmatpush1.bf16.msra.mxu0 0
        %580 = vmatprep.mubr.bf16.mxu0 0
        %581 = vmatmul.mubr.bf16.gmra.mrb[0].mxu0 %v533
        %v582 = vpop.f32.mrb[0].mxu0
        %v583 = vadd.f32 0.0, %v582
        %v584 = vpop.f32.mrb[0].mxu0
        %v585 = vpop.f32.mrb[0].mxu0
        %v586 = vadd.f32 0.0, %v585
        %v587 = vpop.f32.mrb[0].mxu0
        %588 = vmatprep.mubr.bf16.mxu0 0
        %589 = vmatmul.mubr.bf16.gmra.mrb[0].mxu0 %v536
        %v590 = vpop.f32.mrb[0].mxu0
        %v591 = vadd.f32 0.0, %v590
        %v592 = vpop.f32.mrb[0].mxu0
        %v593 = vpop.f32.mrb[0].mxu0
        %v594 = vadd.f32 0.0, %v593
        %v595 = vpop.f32.mrb[0].mxu0
        %596 = vmatprep.mubr.bf16.mxu0 0
        %597 = vmatmul.mubr.bf16.gmra.mrb[0].mxu0 %v539
        %v598 = vpop.f32.mrb[0].mxu0
        %v599 = vadd.f32 0.0, %v598
        %v600 = vpop.f32.mrb[0].mxu0
        %v601 = vpop.f32.mrb[0].mxu0
        %v602 = vadd.f32 0.0, %v601
        %v603 = vpop.f32.mrb[0].mxu0
        %604 = vmatprep.mubr.bf16.mxu0 0
        %605 = vmatmul.mubr.bf16.gmra.mrb[0].mxu0 %v542
        %v606 = vpop.f32.mrb[0].mxu0
        %v607 = vadd.f32 0.0, %v606
        %v608 = vpop.f32.mrb[0].mxu0
        %v609 = vpop.f32.mrb[0].mxu0
        %v610 = vadd.f32 0.0, %v609
        %v611 = vpop.f32.mrb[0].mxu0
        %612 = vdwg.mxu0
        %v613 = vsub.f32 0.0, %v583
        %v614 = vsub.f32 0.0, %v586
        %v615 = vsub.f32 0.0, %v591
        %v616 = vsub.f32 0.0, %v594
        %v617 = vsub.f32 0.0, %v599
        %v618 = vsub.f32 0.0, %v602
        %v619 = vsub.f32 0.0, %v607
        %v620 = vsub.f32 0.0, %v610
        %v621 = vmul.f32 %v613, 1.442695
        %v622 = vpow.pop %v621
        %v623 = vmul.f32 %v614, 1.442695
        %v624 = vpow.pop %v623
        %v625 = vmul.f32 %v615, 1.442695
        %v626 = vpow.pop %v625
        %v627 = vmul.f32 %v616, 1.442695
        %v628 = vpow.pop %v627
        %v629 = vmul.f32 %v617, 1.442695
        %v630 = vpow.pop %v629
        %v631 = vmul.f32 %v618, 1.442695
        %v632 = vpow.pop %v631
        %v633 = vmul.f32 %v619, 1.442695
        %v634 = vpow.pop %v633
        %v635 = vmul.f32 %v620, 1.442695
        %v636 = vpow.pop %v635
        %v637 = vadd.f32 %v622, 1.0
        %v638 = vadd.f32 %v624, 1.0
        %v639 = vadd.f32 %v626, 1.0
        %v640 = vadd.f32 %v628, 1.0
        %v641 = vadd.f32 %v630, 1.0
        %v642 = vadd.f32 %v632, 1.0
        %v643 = vadd.f32 %v634, 1.0
        %v644 = vadd.f32 %v636, 1.0
        %v645 = vrcp.pop %v637
        %v646 = vrcp.pop %v638
        %v647 = vrcp.pop %v639
        %v648 = vrcp.pop %v640
        %v649 = vrcp.pop %v641
        %v650 = vrcp.pop %v642
        %v651 = vrcp.pop %v643
        %v652 = vrcp.pop %v644
        %v653 = vadd.f32 %v645, 1.0
        %v654 = vadd.f32 %v646, 1.0
        %v655 = vadd.f32 %v647, 1.0
        %v656 = vadd.f32 %v648, 1.0
        %v657 = vadd.f32 %v649, 1.0
        %v658 = vadd.f32 %v650, 1.0
        %v659 = vadd.f32 %v651, 1.0
        %v660 = vadd.f32 %v652, 1.0
        %v661 = vmul.f32 %v247, %v653
        %v662 = vmul.f32 %v248, %v654
        %v663 = vmul.f32 %v249, %v655
        %v664 = vmul.f32 %v250, %v656
        %v665 = vmul.f32 %v251, %v657
        %v666 = vmul.f32 %v252, %v658
        %v667 = vmul.f32 %v253, %v659
        %v668 = vmul.f32 %v254, %v660
        %669 = vst.msk [vmem:[%s243] sm:$0xff] %vm286, %v661
        %670 = vst.msk [vmem:[%s243 + $0x8] sm:$0xff] %vm286, %v662
        %671 = vst.msk [vmem:[%s243 + $0x10] sm:$0xff] %vm286, %v663
        %672 = vst.msk [vmem:[%s243 + $0x18] sm:$0xff] %vm286, %v664
        %673 = vst.msk [vmem:[%s243 + $0x20] sm:$0xff] %vm286, %v665
        %674 = vst.msk [vmem:[%s243 + $0x28] sm:$0xff] %vm286, %v666
        %675 = vst.msk [vmem:[%s243 + $0x30] sm:$0xff] %vm286, %v667
        %676 = vst.msk [vmem:[%s243 + $0x38] sm:$0xff] %vm286, %v668
        %s677 = sand.u32 %s140, 1
        %s678 = scalar_lea.sflag [#allocation4], %s677
        %s679 = sand.u32 %s140, 1
        %s680 = smul.addr %s679, 64
        %s681 = scalar_lea.vmem [#allocation5], %s680
        // Predicated region
        $region45: #{action_forward.1} parent=39 // pred_check
          %p682 = pneg %p150
        $region46: #{action_forward.1} parent=39 // pred_check_branch
          %684 = sbr.rel (%p682) target = $region48
        $region47: #{action_forward.1} parent=39 // pred_region
          %s685 = smul.u32 2, %s22
          %s687 = ssub.s32 1024, 1024
          %688 = vsyncadd %s678, %s687
          %s689 = smul.addr %s685, 4
          %s690 = smul.addr %s689, 128
          %s691 = scalar_lea.hbm %s5, %s690
          %s692 = sshll.u32 %s681, 4
          %s693 = int_to_ptr.vmem [resolvable:$true] %s692
          %698 = dma.vmem_to_hbm [thread:$0]  %s693, 1024, %s691, %s678, 128, 128, 8
        $region48: #{action_forward.1} parent=39 // pred_fallthru
          _
      $region40: #{action_forward.1} parent=5 // pred_fallthru
        _
      %p699 = scmp.le.s32.totalorder 2, %s17
      // Predicated region
      $region49: #{action_forward.1} parent=5 // pred_check
        %p700 = pneg %p699
      $region50: #{action_forward.1} parent=5 // pred_check_branch
        %702 = sbr.rel (%p700) target = $region52
      $region51: #{action_forward.1} parent=5 // pred_region
        %s703 = ssub.s32 %s17, 2
        // Predicated region
        $region53: #{action_forward.1} parent=51 // pred_check
          %p704 = pneg %p156
        $region54: #{action_forward.1} parent=51 // pred_check_branch
          %706 = sbr.rel (%p704) target = $region56
        $region55: #{action_forward.1} parent=51 // pred_region
          %s707 = sand.u32 %s141, 1
          %s708 = scalar_lea.sflag [#allocation4], %s707
          %s709 = sand.u32 %s141, 1
          %s710 = smul.addr %s709, 64
          %s711 = scalar_lea.vmem [#allocation5], %s710
          %712 = dma.done %s708, 1024
        $region56: #{action_forward.1} parent=51 // pred_fallthru
          _
      $region52: #{action_forward.1} parent=5 // pred_fallthru
        _
    $region6: #{action_forward.1} parent=1 // loop_footer
      %s21 = sadd.s32 1, %s17
    $region7: #{action_forward.1} parent=1 // loop_footer_branch
      %16 = sbr.rel target = $region3
    $region8: #{action_forward.1} parent=1 // loop_exit
      _
    %713 = vsyncpa [#allocation3], 1
    %s714 = scalar_lea.sflag [#allocation3], 1
    %715 = vsyncpa %s714, 1
    %716 = vsyncpa [#allocation4], 1
    %s717 = scalar_lea.sflag [#allocation4], 1
    %718 = vsyncpa %s717, 1

</llo_original>
